<compile_context>
chip_gen: v5e
topology: v5e:2x2
jax: 0.10.0
libtpu: 0.0.40
codegen_flags: <defaults>
</compile_context>

<pallas_src>
import functools

import jax
import jax.numpy as jnp
from jax.experimental import pallas as pl
from jax.experimental.pallas import tpu as pltpu


def _gaussian_encoding_kernel(v_ref, bt_ref, bias_ref, out_ref, *, use_mxu):
    bias = bias_ref[...]  # (1, W), broadcast over rows
    if use_mxu:
        vp = jnp.dot(
            v_ref[...],
            bt_ref[...],
            preferred_element_type=jnp.float32,
            precision=jax.lax.Precision.HIGHEST,
        )
        vp = vp + bias
    else:
        # Tiny contraction dim: unrolled VPU broadcast-mul/add sum.
        v = v_ref[...]          # (bm, d_eff)
        bt = bt_ref[...]        # (d_eff, W)
        vp = bias + v[:, 0:1] * bt[0:1, :]
        for t in range(1, v.shape[-1]):
            vp = vp + v[:, t : t + 1] * bt[t : t + 1, :]
    # Single full-width (lane-dense) store; sin is folded in via the phase bias.
    out_ref[...] = jnp.cos(vp).astype(out_ref.dtype)


def _round_up(x, m):
    return ((x + m - 1) // m) * m


@functools.partial(jax.jit, static_argnames=("out_dtype", "target_step_bytes"))
def gaussian_encoding(v, b, out_dtype=None, target_step_bytes=4 * 1024 * 1024):
    """v: (..., input_size), b: (encoded_size, input_size) -> (..., 2*encoded_size)."""
    out_dtype = jnp.float32 if out_dtype is None else out_dtype
    orig_shape = v.shape
    d_in = orig_shape[-1]
    e = b.shape[0]
    width = 2 * e

    m = 1
    for s in orig_shape[:-1]:
        m *= s

    v2d = v.reshape(m, d_in).astype(jnp.float32)

    # Pre-scaled, doubled feature matrix and the phase bias (sin -> shifted cos).
    bt_scaled = (2.0 * jnp.pi) * jnp.transpose(b).astype(jnp.float32)   # (d_in, E)
    bt2 = jnp.concatenate([bt_scaled, bt_scaled], axis=1)               # (d_in, 2E)
    bias = jnp.concatenate(
        [jnp.zeros((e,), jnp.float32),
         jnp.full((e,), -0.5 * jnp.pi, jnp.float32)]
    )                                                                    # (2E,)

    # ---- lane folding: pack k rows per kernel row when 2E < 128 -------------
    k = 1
    if width < 128 and m > 0:
        kf = 128 // width
        if kf >= 2 and m % kf == 0:
            k = kf
    if k > 1:
        v2d = v2d.reshape(m // k, k * d_in)
        bt2 = jnp.kron(jnp.eye(k, dtype=jnp.float32), bt2)   # (k*d_in, k*2E)
        bias = jnp.tile(bias, k)                              # (k*2E,)

    rows = m // k
    d_eff = k * d_in
    w = k * width
    bias2d = bias.reshape(1, w)

    use_mxu = (k > 1) or (d_in > 8)

    # ---- row-tile sizing: target ~target_step_bytes of traffic per grid step
    out_itemsize = jnp.dtype(out_dtype).itemsize
    row_bytes = 4 * d_eff + out_itemsize * w
    vmem_budget = 24 * 1024 * 1024          # headroom under 48 MiB limit below
    budget = min(target_step_bytes, vmem_budget // 2)
    bm = max(8, (budget // max(row_bytes, 1)) // 8 * 8)
    bm = min(bm, _round_up(max(rows, 1), 8))
    # Keep >= 2 grid steps when there is enough work (v7x megacore sharding).
    if rows > 256 and pl.cdiv(rows, bm) < 2:
        bm = max(8, _round_up(pl.cdiv(rows, 2), 8))
    grid = pl.cdiv(max(rows, 1), bm)

    kernel = functools.partial(_gaussian_encoding_kernel, use_mxu=use_mxu)

    out = pl.pallas_call(
        kernel,
        out_shape=jax.ShapeDtypeStruct((rows, w), out_dtype),
        grid_spec=pltpu.PrefetchScalarGridSpec(
            num_scalar_prefetch=0,
            grid=(grid,),
            in_specs=[
                pl.BlockSpec((bm, d_eff), lambda i: (i, 0)),
                pl.BlockSpec((d_eff, w), lambda i: (0, 0)),
                pl.BlockSpec((1, w), lambda i: (0, 0)),
            ],
            out_specs=pl.BlockSpec((bm, w), lambda i: (i, 0)),
        ),
        compiler_params=pltpu.CompilerParams(
            dimension_semantics=("parallel",),
            vmem_limit_bytes=48 * 1024 * 1024,
        ),
    )(v2d, bt2, bias2d)

    # Free row-major reshape (un-fold rows and restore leading batch dims).
    return out.reshape(*orig_shape[:-1], width)


def _reference(v, b):
    vp = 2.0 * jnp.pi * jnp.einsum("...d,ed->...e", v, b)
    return jnp.concatenate([jnp.cos(vp), jnp.sin(vp)], axis=-1)


if __name__ == "__main__":
    # Module config (deterministic, synthetic): sigma, input_size, encoded_size
    sigma = 1.0
    input_size = 3
    encoded_size = 32

    key = jax.random.PRNGKey(0)
    kb, kv, kv2 = jax.random.split(key, 3)

    # b = randn(encoded_size, input_size) * sigma  (frozen parameter)
    b = jax.random.normal(kb, (encoded_size, input_size), dtype=jnp.float32) * sigma

    # Example coordinates: batch=2, seq=8, input_size=3  (lane-folded path, MXU)
    v = jax.random.normal(kv, (2, 8, input_size), dtype=jnp.float32)
    out = jax.block_until_ready(gaussian_encoding(v, b))
    ref = _reference(v, b)
    assert out.shape == (2, 8, 2 * encoded_size)
    assert jnp.allclose(out, ref, atol=1e-5, rtol=1e-5)

    # Second check: ragged row count (M = 35, not foldable -> VPU path,
    # non-divisible grid handled by Pallas boundary masking, no pad/slice).
    v_ragged = jax.random.normal(kv2, (5, 7, input_size), dtype=jnp.float32)
    out_r = jax.block_until_ready(gaussian_encoding(v_ragged, b))
    ref_r = _reference(v_ragged, b)
    assert out_r.shape == (5, 7, 2 * encoded_size)
    assert jnp.allclose(out_r, ref_r, atol=1e-5, rtol=1e-5)

    print("KERNEL_OK")
</pallas_src>

<mosaic_0001>
module attributes {stable_mosaic.version = 11 : i64} {
  func.func @_gaussian_encoding_kernel(%arg0: i32, %arg1: memref<8x6xf32, #tpu.memory_space<vmem>>, %arg2: memref<6x128xf32, #tpu.memory_space<vmem>>, %arg3: memref<1x128xf32, #tpu.memory_space<vmem>>, %arg4: memref<8x128xf32, #tpu.memory_space<vmem>>) attributes {dimension_semantics = [#tpu.dimension_semantics<parallel>], iteration_bounds = array<i64: 1>, scalar_prefetch = 0 : i64, scratch_operands = 0 : i64, tpu.core_type = #tpu.core_type<tc>, window_params = [{transform_indices = @transform_0, window_bounds = array<i64: 8, 6>}, {pipeline_mode = #tpu.pipeline_mode<synchronous>, transform_indices = @transform_1, window_bounds = array<i64: 6, 128>}, {pipeline_mode = #tpu.pipeline_mode<synchronous>, transform_indices = @transform_2, window_bounds = array<i64: 1, 128>}, {transform_indices = @transform_3, window_bounds = array<i64: 8, 128>}]} {
    %c0 = arith.constant 0 : index
    %c0_0 = arith.constant 0 : index
    %0 = vector.load %arg3[%c0, %c0_0] : memref<1x128xf32, #tpu.memory_space<vmem>>, vector<1x128xf32>
    %c0_1 = arith.constant 0 : index
    %c0_2 = arith.constant 0 : index
    %1 = vector.load %arg1[%c0_1, %c0_2] : memref<8x6xf32, #tpu.memory_space<vmem>>, vector<8x6xf32>
    %c0_3 = arith.constant 0 : index
    %c0_4 = arith.constant 0 : index
    %2 = vector.load %arg2[%c0_3, %c0_4] : memref<6x128xf32, #tpu.memory_space<vmem>>, vector<6x128xf32>
    %cst = arith.constant dense<0.000000e+00> : vector<8x128xf32>
    %3 = tpu.matmul %1, %2, %cst {dimension_numbers = #tpu.dot_dimension_numbers<[1], [0], [0], [1], [0, 0, 1, 1], [], []>, precision = #tpu.contract_precision<fp32>} : vector<8x6xf32>, vector<6x128xf32>, vector<8x128xf32> -> vector<8x128xf32>
    %4 = vector.broadcast %0 : vector<1x128xf32> to vector<8x128xf32>
    %5 = arith.addf %3, %4 : vector<8x128xf32>
    %6 = math.cos %5 : vector<8x128xf32>
    %c0_5 = arith.constant 0 : index
    %c0_6 = arith.constant 0 : index
    %7 = vector.load %arg4[%c0_5, %c0_6] : memref<8x128xf32, #tpu.memory_space<vmem>>, vector<8x128xf32>
    tpu.vector_store %arg4[%c0_5, %c0_6], %6 {strides = array<i32>} : memref<8x128xf32, #tpu.memory_space<vmem>>, vector<8x128xf32>,
    return
  }
  func.func @transform_0(%arg0: i32) -> (i32, i32) {
    %c0_i32 = arith.constant 0 : i32
    %c0_i32_0 = arith.constant 0 : i32
    return %arg0, %c0_i32 : i32, i32
  }
  func.func @transform_1(%arg0: i32) -> (i32, i32) {
    %c0_i32 = arith.constant 0 : i32
    %c0_i32_0 = arith.constant 0 : i32
    %c0_i32_1 = arith.constant 0 : i32
    return %c0_i32, %c0_i32_0 : i32, i32
  }
  func.func @transform_2(%arg0: i32) -> (i32, i32) {
    %c0_i32 = arith.constant 0 : i32
    %c0_i32_0 = arith.constant 0 : i32
    %c0_i32_1 = arith.constant 0 : i32
    return %c0_i32, %c0_i32_0 : i32, i32
  }
  func.func @transform_3(%arg0: i32) -> (i32, i32) {
    %c0_i32 = arith.constant 0 : i32
    %c0_i32_0 = arith.constant 0 : i32
    return %arg0, %c0_i32 : i32, i32
  }
}

</mosaic_0001>

<llo_original>
// kernel: tile.6
$region0: #{tile.6}
  #allocation0 [shape = 's32[1]{0}', space=sflag, size = 0x4, scoped, tag = 'scoped memory for tile.6']
  %s0 = inlined_call_operand.vmem [shape: f32[64], index: 0, kind: input, shape index: {}]
  %s1 = inlined_call_operand.vmem [shape: f32[2,64], index: 1, kind: output, shape index: {}]
  // Predicated region
  $region2: #{tile.6} parent=0 // pred_check
    _
  $region3: #{tile.6} parent=0 // pred_check_branch
    %3 = sbr.rel (0) target = $region5
  $region4: #{tile.6} parent=0 // pred_region
    _
  $region5: #{tile.6} parent=0 // pred_fallthru
    _
  %v4 = vld [vmem:[%s0] ss:$0 sm:$0xff]
  %5 = vst [vmem:[%s1] sm:$0x3] %v4

// kernel: tile.7
$region0: #{tile.7}
  %s0 = inlined_call_operand.vmem [shape: f32[2,64], index: 0, kind: input, shape index: {}]
  %s1 = inlined_call_operand.vmem [shape: f32[1,128], index: 1, kind: output, shape index: {}]
  $region1: #{tile.7} parent=0
    #allocation0 [shape = 'u8[4096]{0}', space=vmem, size = 0x1000, scoped, tag = 'scoped mem for output reshape']
    #allocation1 [shape = 'u8[4096]{0}', space=vmem, size = 0x1000, scoped, tag = 'scoped mem for input reshape']
    %s3 = ssub.s32 4, 1
    %v4 = vld [vmem:[%s0] sm:%s3]
    %5 = vst [vmem:[#allocation1] sm:%s3] %v4
    %v6 = vld [vmem:[#allocation1] sm:$0x1]
    %vm7 = vcmask 523264
    %8 = vst.msk [vmem:[#allocation0] sm:$0x1] %vm7, %v6
    %s9 = scalar_lea.vmem [#allocation1], 1
    %v10 = vld [vmem:[%s9] sm:$0x1]
    %11 = vrot.lane.b32.xlu0 %v10, 64
    %v12 = vpop.permute.xlu0 %11
    %vm13 = vcmask 1048064
    %14 = vst.msk [vmem:[#allocation0] sm:$0x1] %vm13, %v12
    %s16 = ssub.s32 2, 1
    %v17 = vld [vmem:[#allocation0] sm:%s16]
    %s19 = ssub.s32 2, 1
    %20 = vst [vmem:[%s1] sm:%s19] %v17

// kernel: gaussian_encoding.1
$region0: #{gaussian_encoding.1}
  #allocation0 [shape = 'u32[]', space=smem, size = 0x4, offset = 0x4, fixed_abs, tag = 'smem constant byte address 0x4 - core index']
  #allocation1 [shape = 'u32[72,128]{1,0:T(1,128)}', space=vmem, size = 0x9000, scoped, tag = 'internal scratch']
  %s0 = inlined_call_operand.vmem [shape: f32[8,6], index: 0, kind: input, shape index: {}]
  %s1 = inlined_call_operand.vmem [shape: f32[6,128], index: 1, kind: input, shape index: {}]
  %s2 = inlined_call_operand.vmem [shape: f32[1,128], index: 2, kind: input, shape index: {}]
  %s3 = inlined_call_operand.vmem [shape: f32[8,128], index: 3, kind: output, shape index: {}]
  %s4 = sld [smem:[#allocation0]]
  $region22: #{gaussian_encoding.1} parent=0
    _
  %s6 = ssub.s32 1, %s4
  %s7 = scalar_select 0, %s6, %s4
  // Predicated region
  $region2: #{gaussian_encoding.1} parent=0 // pred_check
    _
  $region3: #{gaussian_encoding.1} parent=0 // pred_check_branch
    %9 = sbr.rel (0) target = $region5
  $region4: #{gaussian_encoding.1} parent=0 // pred_region
    _
  $region5: #{gaussian_encoding.1} parent=0 // pred_fallthru
    _
  // Predicated region
  $region6: #{gaussian_encoding.1} parent=0 // pred_check
    _
  $region7: #{gaussian_encoding.1} parent=0 // pred_check_branch
    %11 = sbr.rel (0) target = $region9
  $region8: #{gaussian_encoding.1} parent=0 // pred_region
    _
  $region9: #{gaussian_encoding.1} parent=0 // pred_fallthru
    _
  // Predicated region
  $region10: #{gaussian_encoding.1} parent=0 // pred_check
    _
  $region11: #{gaussian_encoding.1} parent=0 // pred_check_branch
    %13 = sbr.rel (0) target = $region13
  $region12: #{gaussian_encoding.1} parent=0 // pred_region
    _
  $region13: #{gaussian_encoding.1} parent=0 // pred_fallthru
    _
  %v14 = vld [vmem:[%s2] sm:$0x1]
  %v15 = vld [vmem:[%s0] sm:$0xff]
  %v16 = vld [vmem:[%s1] sm:$0x3f]
  %v18 = vperm.slane %v14, 0
  %vm20 = vcmask 48128
  %v22 = vsel %vm20, %v15, 0
  %vm24 = vcmask 1045504
  %v26 = vsel %vm24, %v16, 0
  %28 = vmatpush.msra.mxu0 0.0
  %29 = vmatpush.msra.mxu0 0.0
  %30 = vmatpush.msra.mxu0 0.0
  %31 = vmatpush.msra.mxu0 0.0
  %32 = vmatpush.msra.mxu0 0.0
  %33 = vmatpush.msra.mxu0 0.0
  %34 = vmatpush.msra.mxu0 0.0
  %35 = vmatpush.msra.mxu0 0.0
  %36 = vmatpush.msra.mxu0 0.0
  %37 = vmatpush.msra.mxu0 0.0
  %38 = vmatpush.msra.mxu0 0.0
  %39 = vmatpush.msra.mxu0 0.0
  %40 = vmatpush.msra.mxu0 0.0
  %41 = vmatpush.msra.mxu0 0.0
  %42 = vmatpush.msra.mxu0 0.0
  %v43 = vand.u32 %v26, 4294901760
  %44 = vmatpush.msra.mxu0 %v43
  %v45 = vand.u32 %v22, 4294901760
  %v46 = vsub.f32 %v22, %v45
  %v47 = vand.u32 %v46, 4294901760
  %v48 = vsub.f32 %v46, %v47
  %v49 = vand.u32 %v48, 4294901760
  %50 = vmatmul.f32.gmra.mxu0 %v49
  %v51 = vpop.f32.mrf.mxu0
  %v52 = vadd.f32 %v18, %v51
  %53 = vdwg.mxu0
  %54 = vmatpush.msra.mxu0 0.0
  %55 = vmatpush.msra.mxu0 0.0
  %56 = vmatpush.msra.mxu0 0.0
  %57 = vmatpush.msra.mxu0 0.0
  %58 = vmatpush.msra.mxu0 0.0
  %59 = vmatpush.msra.mxu0 0.0
  %60 = vmatpush.msra.mxu0 0.0
  %61 = vmatpush.msra.mxu0 0.0
  %62 = vmatpush.msra.mxu0 0.0
  %63 = vmatpush.msra.mxu0 0.0
  %64 = vmatpush.msra.mxu0 0.0
  %65 = vmatpush.msra.mxu0 0.0
  %66 = vmatpush.msra.mxu0 0.0
  %67 = vmatpush.msra.mxu0 0.0
  %68 = vmatpush.msra.mxu0 0.0
  %v69 = vand.u32 %v26, 4294901760
  %v70 = vsub.f32 %v26, %v69
  %v71 = vand.u32 %v70, 4294901760
  %v72 = vsub.f32 %v70, %v71
  %v73 = vand.u32 %v72, 4294901760
  %74 = vmatpush.msra.mxu0 %v73
  %v75 = vand.u32 %v22, 4294901760
  %76 = vmatmul.f32.gmra.mxu0 %v75
  %v77 = vpop.f32.mrf.mxu0
  %v78 = vadd.f32 %v52, %v77
  %79 = vdwg.mxu0
  %80 = vmatpush.msra.mxu0 0.0
  %81 = vmatpush.msra.mxu0 0.0
  %82 = vmatpush.msra.mxu0 0.0
  %83 = vmatpush.msra.mxu0 0.0
  %84 = vmatpush.msra.mxu0 0.0
  %85 = vmatpush.msra.mxu0 0.0
  %86 = vmatpush.msra.mxu0 0.0
  %87 = vmatpush.msra.mxu0 0.0
  %88 = vmatpush.msra.mxu0 0.0
  %89 = vmatpush.msra.mxu0 0.0
  %90 = vmatpush.msra.mxu0 0.0
  %91 = vmatpush.msra.mxu0 0.0
  %92 = vmatpush.msra.mxu0 0.0
  %93 = vmatpush.msra.mxu0 0.0
  %94 = vmatpush.msra.mxu0 0.0
  %v95 = vand.u32 %v26, 4294901760
  %v96 = vsub.f32 %v26, %v95
  %97 = vmatpush.msra.mxu0 %v96
  %v98 = vand.u32 %v22, 4294901760
  %v99 = vsub.f32 %v22, %v98
  %100 = vmatmul.f32.gmra.mxu0 %v99
  %v101 = vpop.f32.mrf.mxu0
  %v102 = vadd.f32 %v78, %v101
  %103 = vdwg.mxu0
  %104 = vmatpush.msra.mxu0 0.0
  %105 = vmatpush.msra.mxu0 0.0
  %106 = vmatpush.msra.mxu0 0.0
  %107 = vmatpush.msra.mxu0 0.0
  %108 = vmatpush.msra.mxu0 0.0
  %109 = vmatpush.msra.mxu0 0.0
  %110 = vmatpush.msra.mxu0 0.0
  %111 = vmatpush.msra.mxu0 0.0
  %112 = vmatpush.msra.mxu0 0.0
  %113 = vmatpush.msra.mxu0 0.0
  %114 = vmatpush.msra.mxu0 0.0
  %115 = vmatpush.msra.mxu0 0.0
  %116 = vmatpush.msra.mxu0 0.0
  %117 = vmatpush.msra.mxu0 0.0
  %118 = vmatpush.msra.mxu0 0.0
  %v119 = vand.u32 %v26, 4294901760
  %120 = vmatpush.msra.mxu0 %v119
  %v121 = vand.u32 %v22, 4294901760
  %v122 = vsub.f32 %v22, %v121
  %v123 = vand.u32 %v122, 4294901760
  %124 = vmatmul.f32.gmra.mxu0 %v123
  %v125 = vpop.f32.mrf.mxu0
  %v126 = vadd.f32 %v102, %v125
  %127 = vdwg.mxu0
  %128 = vmatpush.msra.mxu0 0.0
  %129 = vmatpush.msra.mxu0 0.0
  %130 = vmatpush.msra.mxu0 0.0
  %131 = vmatpush.msra.mxu0 0.0
  %132 = vmatpush.msra.mxu0 0.0
  %133 = vmatpush.msra.mxu0 0.0
  %134 = vmatpush.msra.mxu0 0.0
  %135 = vmatpush.msra.mxu0 0.0
  %136 = vmatpush.msra.mxu0 0.0
  %137 = vmatpush.msra.mxu0 0.0
  %138 = vmatpush.msra.mxu0 0.0
  %139 = vmatpush.msra.mxu0 0.0
  %140 = vmatpush.msra.mxu0 0.0
  %141 = vmatpush.msra.mxu0 0.0
  %142 = vmatpush.msra.mxu0 0.0
  %v143 = vand.u32 %v26, 4294901760
  %v144 = vsub.f32 %v26, %v143
  %v145 = vand.u32 %v144, 4294901760
  %146 = vmatpush.msra.mxu0 %v145
  %v147 = vand.u32 %v22, 4294901760
  %148 = vmatmul.f32.gmra.mxu0 %v147
  %v149 = vpop.f32.mrf.mxu0
  %v150 = vadd.f32 %v126, %v149
  %151 = vdwg.mxu0
  %152 = vmatpush.msra.mxu0 0.0
  %153 = vmatpush.msra.mxu0 0.0
  %154 = vmatpush.msra.mxu0 0.0
  %155 = vmatpush.msra.mxu0 0.0
  %156 = vmatpush.msra.mxu0 0.0
  %157 = vmatpush.msra.mxu0 0.0
  %158 = vmatpush.msra.mxu0 0.0
  %159 = vmatpush.msra.mxu0 0.0
  %160 = vmatpush.msra.mxu0 0.0
  %161 = vmatpush.msra.mxu0 0.0
  %162 = vmatpush.msra.mxu0 0.0
  %163 = vmatpush.msra.mxu0 0.0
  %164 = vmatpush.msra.mxu0 0.0
  %165 = vmatpush.msra.mxu0 0.0
  %166 = vmatpush.msra.mxu0 0.0
  %v167 = vand.u32 %v26, 4294901760
  %168 = vmatpush.msra.mxu0 %v167
  %v169 = vand.u32 %v22, 4294901760
  %170 = vmatmul.f32.gmra.mxu0 %v169
  %v171 = vpop.f32.mrf.mxu0
  %v172 = vadd.f32 %v150, %v171
  %173 = vdwg.mxu0
  %v174 = vand.u32 2147483647, %v172
  %vm175 = vcmp.le.f32.partialorder %v174, 0.7853982
  %vm176 = vcmp.lt.s32.totalorder %v172, 0
  %v177 = vand.u32 %v172, 2139095040
  %v178 = vshrl.u32 %v177, 23
  %v179 = vsub.s32 %v178, 127
  %v180 = vand.u32 2147483647, %v172
  %v181 = vand.u32 %v180, 8388607
  %v182 = vor.u32 %v181, 8388608
  %v183 = vsub.s32 0, %v182
  %v184 = vadd.s32 %v179, 1
  %vm185 = vcmp.gt.s32.totalorder %v184, 0
  %v186 = vsel %vm185, %v184, 0
  %v187 = vshrl.u32 %v186, 5
  %v188 = vand.u32 %v186, 31
  %v189 = vsub.s32 32, %v188
  %v190 = vshrl.u32 683565275, %v189
  %v191 = vshll.u32 683565275, %v188
  %v192 = vshrl.u32 2475754826, %v189
  %v193 = vor.u32 %v191, %v192
  %v194 = vshll.u32 2475754826, %v188
  %v195 = vshrl.u32 2131351028, %v189
  %v196 = vor.u32 %v194, %v195
  %v197 = vshll.u32 2131351028, %v188
  %v198 = vshrl.u32 2102212464, %v189
  %v199 = vor.u32 %v197, %v198
  %v200 = vshll.u32 2102212464, %v188
  %v201 = vshrl.u32 920167782, %v189
  %v202 = vor.u32 %v200, %v201
  %v203 = vshll.u32 920167782, %v188
  %v204 = vshrl.u32 1326507024, %v189
  %v205 = vor.u32 %v203, %v204
  %vm206 = vcmp.lt.s32.totalorder %v187, 1
  %vm207 = vcmp.lt.s32.totalorder %v187, 2
  %vm208 = vcmp.lt.s32.totalorder %v187, 3
  %vm209 = vcmp.lt.s32.totalorder %v187, 4
  %v210 = vsel %vm206, %v190, %v193
  %v211 = vsel %vm209, %v199, 2102212464
  %v212 = vsel %vm208, %v196, %v211
  %v213 = vsel %vm207, %v210, %v212
  %v214 = vsel %vm206, %v193, %v196
  %v215 = vsel %vm209, %v202, 920167782
  %v216 = vsel %vm208, %v199, %v215
  %v217 = vsel %vm207, %v214, %v216
  %v218 = vsel %vm206, %v196, %v199
  %v219 = vsel %vm209, %v205, 1326507024
  %v220 = vsel %vm208, %v202, %v219
  %v221 = vsel %vm207, %v218, %v220
  %v222 = vshll.u32 %v182, 8
  %v223 = vand.u32 %v222, 65535
  %v224 = vshrl.u32 %v222, 16
  %v225 = vand.u32 %v221, 65535
  %v226 = vshrl.u32 %v221, 16
  %v227 = vmul.u32 %v223, %v225
  %v228 = vmul.u32 %v223, %v226
  %v229 = vmul.u32 %v224, %v225
  %v230 = vmul.u32 %v224, %v226
  %v231 = vshll.u32 %v228, 16
  %v232 = vshrl.u32 %v228, 16
  %v233 = vshll.u32 %v229, 16
  %v234 = vshrl.u32 %v229, 16
  %vm235 = vc.u32 %v227, %v231
  %v236 = vsel %vm235, 1, 0
  %v237 = vadd.s32 %v227, %v231
  %v238 = vadd.s32 %v230, %v236
  %vm239 = vc.u32 %v237, %v233
  %v240 = vsel %vm239, 1, 0
  %v241 = vadd.s32 %v237, %v233
  %v242 = vadd.s32 %v238, %v240
  %v243 = vadd.s32 %v242, %v232
  %v244 = vadd.s32 %v243, %v234
  %v245 = vand.u32 %v222, 65535
  %v246 = vshrl.u32 %v222, 16
  %v247 = vand.u32 %v217, 65535
  %v248 = vshrl.u32 %v217, 16
  %v249 = vmul.u32 %v245, %v247
  %v250 = vmul.u32 %v245, %v248
  %v251 = vmul.u32 %v246, %v247
  %v252 = vmul.u32 %v246, %v248
  %v253 = vshll.u32 %v250, 16
  %v254 = vshrl.u32 %v250, 16
  %v255 = vshll.u32 %v251, 16
  %v256 = vshrl.u32 %v251, 16
  %vm257 = vc.u32 %v249, %v253
  %v258 = vsel %vm257, 1, 0
  %v259 = vadd.s32 %v249, %v253
  %v260 = vadd.s32 %v252, %v258
  %vm261 = vc.u32 %v259, %v255
  %v262 = vsel %vm261, 1, 0
  %v263 = vadd.s32 %v259, %v255
  %v264 = vadd.s32 %v260, %v262
  %v265 = vadd.s32 %v264, %v254
  %v266 = vadd.s32 %v265, %v256
  %v267 = vmul.u32 %v222, %v213
  %v268 = vadd.s32 %v244, %v263
  %vm269 = vc.u32 %v244, %v263
  %v270 = vadd.s32 %v266, 1
  %v271 = vsel %vm269, %v270, %v266
  %v272 = vadd.s32 %v267, %v271
  %v273 = vadd.s32 %v272, 536870912
  %v274 = vshrl.u32 %v273, 30
  %v275 = vshll.u32 %v274, 30
  %v276 = vsub.s32 %v272, %v275
  %vm277 = vcmp.lt.s32.totalorder %v276, 0
  %v278 = vsub.s32 0, %v276
  %v279 = vsel %vm277, %v278, %v276
  %v280 = vclz %v279
  %v281 = vsub.s32 %v280, 2
  %vm282 = vcmp.gt.s32.totalorder 0, %v281
  %v283 = vsel %vm282, 0, %v281
  %v284 = vsub.s32 32, %v283
  %v285 = vshll.u32 %v276, %v283
  %v286 = vshrl.u32 %v268, %v284
  %v287 = vor.u32 %v285, %v286
  %v288 = vsub.s32 4294967266, %v283
  %v289 = vadd.s32 %v288, 127
  %v290 = vshll.u32 %v289, 23
  %v291 = vor.u32 4788187, %v290
  %v292 = vand.u32 2147483647, %v291
  %v294 = vcvt.s32.f32 %v287
  %v295 = vmul.f32 %v294, %v292
  %v296 = vxor.u32 %v295, 2147483648
  %v297 = vsel %vm176, %v296, %v295
  %v298 = vsub.s32 4, %v274
  %v299 = vsel %vm176, %v298, %v274
  %v300 = vsel %vm175, %v172, %v297
  %v301 = vsel %vm175, 0, %v299
  %v302 = vmul.f32 %v300, %v300
  %v303 = vmul.f32 %v302, -0.001358992
  %v304 = vadd.f32 %v303, 0.041655596
  %v305 = vmul.f32 %v302, %v304
  %v306 = vadd.f32 %v305, -0.4999988
  %v307 = vmul.f32 %v302, %v306
  %v308 = vadd.f32 1.0, %v307
  %v309 = vmul.f32 %v300, %v300
  %v310 = vmul.f32 %v309, -0.00019511016
  %v311 = vadd.f32 %v310, 0.008332121
  %v312 = vmul.f32 %v309, %v311
  %v313 = vadd.f32 %v312, -0.16666654
  %v314 = vmul.f32 %v309, %v313
  %v315 = vadd.f32 %v314, 1.0
  %v316 = vmul.f32 %v315, %v300
  %vm317 = vweird.f32 %v172
  %v318 = vand.u32 %v301, 3
  %vm319 = vcmp.lt.s32.totalorder %v318, 2
  %vm320 = vcmp.eq.s32.totalorder %v318, 0
  %v321 = vxor.u32 %v316, 2147483648
  %v322 = vsel %vm320, %v308, %v321
  %vm323 = vcmp.eq.s32.totalorder %v318, 2
  %v324 = vxor.u32 %v308, 2147483648
  %v325 = vsel %vm323, %v324, %v316
  %v326 = vsel %vm319, %v322, %v325
  %v327 = vsel %vm317, nan, %v326
  %328 = vst [vmem:[%s3] sm:$0xff] %v327
  // Predicated region
  $region14: #{gaussian_encoding.1} parent=0 // pred_check
    _
  $region15: #{gaussian_encoding.1} parent=0 // pred_check_branch
    %330 = sbr.rel (0) target = $region17
  $region16: #{gaussian_encoding.1} parent=0 // pred_region
    _
  $region17: #{gaussian_encoding.1} parent=0 // pred_fallthru
    _
  // Predicated region
  $region18: #{gaussian_encoding.1} parent=0 // pred_check
    _
  $region19: #{gaussian_encoding.1} parent=0 // pred_check_branch
    %332 = sbr.rel (0) target = $region21
  $region20: #{gaussian_encoding.1} parent=0 // pred_region
    _
  $region21: #{gaussian_encoding.1} parent=0 // pred_fallthru
    _

</llo_original>
